<compile_context>
chip_gen: v7x
topology: tpu7x:2x2x1
jax: 0.10.0
libtpu: 0.0.40
codegen_flags: <defaults>
</compile_context>

<pallas_src>
import jax
import jax.numpy as jnp
import numpy as np
from jax import lax
from jax.experimental import pallas as pl
from jax.experimental.pallas import tpu as pltpu

NEG_INF = -1e30


def _fit_tile(t, dim):
    """Largest tile <= t that divides dim (halving until it fits)."""
    t = max(1, min(t, dim))
    while dim % t:
        t //= 2
    return t


# ---------------------------------------------------------------------------
# Tiled linear: y = x @ W_t + b   (W_t is [in, out]); bf16 MXU, f32 accumulate.
# ---------------------------------------------------------------------------
def _linear_kernel(x_ref, w_ref, b_ref, o_ref, acc_ref):
    @pl.when(pl.program_id(2) == 0)
    def _():
        # init accumulator with the (broadcast) bias
        acc_ref[...] = jnp.zeros(acc_ref.shape, jnp.float32) + b_ref[...]

    acc_ref[...] += jnp.dot(x_ref[...], w_ref[...],
                            preferred_element_type=jnp.float32)

    @pl.when(pl.program_id(2) == pl.num_programs(2) - 1)
    def _():
        o_ref[...] = acc_ref[...].astype(o_ref.dtype)


def linear(x, w_t, b, *, block_m=256, block_n=512, block_k=512,
           out_dtype=jnp.bfloat16):
    M, K = x.shape
    N = w_t.shape[1]
    tm, tn, tk = _fit_tile(block_m, M), _fit_tile(block_n, N), _fit_tile(block_k, K)

    # weights are already bf16 (cast once at init); only cast x if needed
    xb = x if x.dtype == jnp.bfloat16 else x.astype(jnp.bfloat16)
    wb = w_t if w_t.dtype == jnp.bfloat16 else w_t.astype(jnp.bfloat16)
    b2d = b.reshape(1, N).astype(jnp.float32)

    cost = pl.CostEstimate(flops=int(2 * M * N * K), transcendentals=0,
                           bytes_accessed=int(2 * (M * K + K * N + M * N) + 4 * N))
    return pl.pallas_call(
        _linear_kernel,
        out_shape=jax.ShapeDtypeStruct((M, N), out_dtype),
        grid_spec=pltpu.PrefetchScalarGridSpec(
            num_scalar_prefetch=0,
            grid=(M // tm, N // tn, K // tk),
            in_specs=[
                pl.BlockSpec((tm, tk), lambda i, j, k: (i, k)),
                pl.BlockSpec((tk, tn), lambda i, j, k: (k, j)),
                pl.BlockSpec((1, tn), lambda i, j, k: (0, j)),
            ],
            out_specs=pl.BlockSpec((tm, tn), lambda i, j, k: (i, j)),
            scratch_shapes=[pltpu.VMEM((tm, tn), jnp.float32)],
        ),
        compiler_params=pltpu.CompilerParams(
            dimension_semantics=("parallel", "parallel", "arbitrary")),
        cost_estimate=cost,
    )(xb, wb, b2d)


# ---------------------------------------------------------------------------
# Rotary (GPT-NeoX, non-interleaved halves over the first rot_dim dims).
# Reads the q / k column groups of the fused [T, 3H] qkv directly.  Uses
# full-head-width cos / signed-sin operands and two lane rolls so the whole
# rotated tile is produced in one vectorized pass and stored with a single
# lane-dense (tile, head_size) store.  softmax_scale is folded into q here.
# ---------------------------------------------------------------------------
def _make_rotary_kernel(head_size, half, q_scale):
    shift_fwd = half                # out[:, i] = x[:, i - half]
    shift_bwd = head_size - half    # out[:, i] = x[:, i + half]

    def kernel(q_ref, k_ref, cosf_ref, sina_ref, sinb_ref, qo_ref, ko_ref):
        cosf = cosf_ref[...]        # cos on [0, rot), 1 on [rot, head_size)
        sina = sina_ref[...]        # -sin on [0, half), 0 elsewhere
        sinb = sinb_ref[...]        # +sin on [half, rot), 0 elsewhere

        def rotate(x_ref, o_ref, scale):
            x = x_ref[...].astype(jnp.float32)
            x_up = pltpu.roll(x, shift_bwd, axis=1)   # x[:, i + half] where needed
            x_dn = pltpu.roll(x, shift_fwd, axis=1)   # x[:, i - half] where needed
            out = x * cosf + x_up * sina + x_dn * sinb
            if scale != 1.0:
                out = out * scale
            o_ref[...] = out.astype(o_ref.dtype)      # single full-width store

        rotate(q_ref, qo_ref, q_scale)
        rotate(k_ref, ko_ref, 1.0)

    return kernel


def apply_rotary(qkv, cos, sin, num_heads, head_size, q_scale, *, block_t=256):
    # qkv: [T, 3H] bf16 (columns ordered (3, num_heads, head_size));
    # cos/sin: [T, rot//2].  Returns bf16 ([T,H] q*scale rotated, [T,H] k rotated).
    T = qkv.shape[0]
    H = num_heads * head_size
    cos = cos.astype(jnp.float32)
    sin = sin.astype(jnp.float32)
    half = cos.shape[-1]
    rot = 2 * half
    pad = head_size - rot
    tr = _fit_tile(block_t, T)

    # full-width operands so the kernel is one fused multiply-add pass
    cosf = jnp.concatenate([cos, cos, jnp.ones((T, pad), jnp.float32)], axis=-1)
    sina = jnp.concatenate([-sin, jnp.zeros((T, half + pad), jnp.float32)], axis=-1)
    sinb = jnp.concatenate([jnp.zeros((T, half), jnp.float32), sin,
                            jnp.zeros((T, pad), jnp.float32)], axis=-1)

    spec_q = pl.BlockSpec((tr, head_size), lambda t, h: (t, h))
    spec_k = pl.BlockSpec((tr, head_size), lambda t, h: (t, num_heads + h))
    spec_cs = pl.BlockSpec((tr, head_size), lambda t, h: (t, 0))
    spec_out = pl.BlockSpec((tr, head_size), lambda t, h: (t, h))

    return pl.pallas_call(
        _make_rotary_kernel(head_size, half, q_scale),
        out_shape=(jax.ShapeDtypeStruct((T, H), jnp.bfloat16),
                   jax.ShapeDtypeStruct((T, H), jnp.bfloat16)),
        grid_spec=pltpu.PrefetchScalarGridSpec(
            num_scalar_prefetch=0,
            grid=(T // tr, num_heads),   # heads innermost: cos/sin blocks fetched once per t tile
            in_specs=[spec_q, spec_k, spec_cs, spec_cs, spec_cs],
            out_specs=(spec_out, spec_out),
        ),
        compiler_params=pltpu.CompilerParams(
            dimension_semantics=("parallel", "parallel")),
    )(qkv, qkv, cosf, sina, sinb)


# ---------------------------------------------------------------------------
# Varlen causal flash attention (prefill), online softmax, block skipping.
# grid = (num_heads, T // block_q, T // block_k)   (kv reduction innermost)
# ---------------------------------------------------------------------------
def _make_attn_kernel(block_q, block_k):
    def kernel(tmin_ref, tmax_ref,                       # SMEM scalar prefetch
               q_ref, k_ref, v_ref, qstart_ref,          # inputs
               o_ref,                                    # output (bf16)
               m_ref, l_ref, acc_ref):                   # f32 scratch
        qi = pl.program_id(1)
        kv = pl.program_id(2)

        @pl.when(kv == 0)
        def _():
            m_ref[...] = jnp.full(m_ref.shape, NEG_INF, jnp.float32)
            l_ref[...] = jnp.zeros(l_ref.shape, jnp.float32)
            acc_ref[...] = jnp.zeros(acc_ref.shape, jnp.float32)

        q_row0 = qi * block_q
        k_col0 = kv * block_k
        # Skip kv tiles entirely above the causal diagonal or entirely before
        # this q tile's earliest sequence start (varlen segment skip).
        active = (k_col0 <= q_row0 + (block_q - 1)) & \
                 (k_col0 + (block_k - 1) >= tmin_ref[qi])
        # Mask only needed if the tile straddles the diagonal or starts before
        # the latest sequence start among this q tile's rows.
        needs_mask = (k_col0 + (block_k - 1) > q_row0) | (k_col0 < tmax_ref[qi])

        def process(masked):
            # q is already pre-scaled by softmax_scale (folded into rotary).
            s = lax.dot_general(q_ref[...], k_ref[...], (((1,), (1,)), ((), ())),
                                preferred_element_type=jnp.float32)
            if masked:
                row = q_row0 + lax.broadcasted_iota(jnp.int32, (block_q, block_k), 0)
                col = k_col0 + lax.broadcasted_iota(jnp.int32, (block_q, block_k), 1)
                keep = (col <= row) & (col >= qstart_ref[...])   # causal & same-seq
                s = jnp.where(keep, s, NEG_INF)
            m_prev = m_ref[...]
            m_new = jnp.maximum(m_prev, jnp.max(s, axis=-1, keepdims=True))
            alpha = jnp.exp(m_prev - m_new)
            p = jnp.exp(s - m_new)
            l_ref[...] = alpha * l_ref[...] + jnp.sum(p, axis=-1, keepdims=True)
            acc_ref[...] = alpha * acc_ref[...] + lax.dot_general(
                p.astype(v_ref.dtype), v_ref[...], (((1,), (0,)), ((), ())),
                preferred_element_type=jnp.float32)
            m_ref[...] = m_new

        @pl.when(active & jnp.logical_not(needs_mask))
        def _():
            process(masked=False)          # unmasked fast path (no iota / where)

        @pl.when(active & needs_mask)
        def _():
            process(masked=True)

        @pl.when(kv == pl.num_programs(2) - 1)
        def _():
            o_ref[...] = (acc_ref[...] *
                          pl.reciprocal(l_ref[...], approx=False)
                          ).astype(o_ref.dtype)

    return kernel


def flash_attention(q2d, k2d, qkv, seq_start, tile_min_start, tile_max_start, *,
                    num_heads, head_size, block_q=256, block_k=256):
    # q2d / k2d: [T, H] bf16 (columns ordered (head, dim));  qkv: [T, 3H] bf16
    # (V is read at column offset 2*num_heads*head_size, no slice copy);
    # seq_start: [T] int32; tile_min/max_start: per-q-tile segment start tables.
    T, H = q2d.shape
    bq, bk = _fit_tile(block_q, T), _fit_tile(block_k, T)
    qstart = seq_start.reshape(T, 1).astype(jnp.int32)

    def kv_block(qi, kv, tmin):
        # Clamp so kv tiles the kernel skips (above the diagonal / before the
        # segment) re-use an already-resident block index => no wasted DMA.
        first = tmin[qi] // bk
        last = (qi * bq + bq - 1) // bk
        return jnp.minimum(jnp.maximum(kv, first), last)

    cost = pl.CostEstimate(flops=int(4 * num_heads * T * T * head_size),
                           transcendentals=int(num_heads * T * T),
                           bytes_accessed=int(2 * 4 * T * H))

    return pl.pallas_call(
        _make_attn_kernel(bq, bk),
        out_shape=jax.ShapeDtypeStruct((T, H), jnp.bfloat16),
        grid_spec=pltpu.PrefetchScalarGridSpec(
            num_scalar_prefetch=2,                       # per-q-tile min/max seq start
            grid=(num_heads, T // bq, T // bk),
            in_specs=[
                pl.BlockSpec((bq, head_size),
                             lambda h, qi, kv, tmin, tmax: (qi, h)),
                pl.BlockSpec((bk, head_size),
                             lambda h, qi, kv, tmin, tmax:
                                 (kv_block(qi, kv, tmin), h)),
                pl.BlockSpec((bk, head_size),
                             lambda h, qi, kv, tmin, tmax:
                                 (kv_block(qi, kv, tmin), 2 * num_heads + h)),
                pl.BlockSpec((bq, 1),
                             lambda h, qi, kv, tmin, tmax: (qi, 0)),
            ],
            out_specs=pl.BlockSpec((bq, head_size),
                                   lambda h, qi, kv, tmin, tmax: (qi, h)),
            scratch_shapes=[
                pltpu.VMEM((bq, 1), jnp.float32),          # m
                pltpu.VMEM((bq, 1), jnp.float32),          # l
                pltpu.VMEM((bq, head_size), jnp.float32),  # acc
            ],
        ),
        compiler_params=pltpu.CompilerParams(
            dimension_semantics=("parallel", "parallel", "arbitrary")),
        cost_estimate=cost,
    )(tile_min_start.astype(jnp.int32), tile_max_start.astype(jnp.int32),
      q2d, k2d, qkv, qstart)


# ---------------------------------------------------------------------------
# Module
# ---------------------------------------------------------------------------
class FlashNeoxAttentionPallas:
    def __init__(self, num_heads, hidden_size, rotary_pct, rotary_emb_base, key,
                 attn_block_q=256, attn_block_k=256,
                 mm_block_m=256, mm_block_n=512, mm_block_k=512):
        self.num_heads = num_heads
        self.hidden_size = hidden_size
        self.head_size = hidden_size // num_heads
        # TODO(synk): support head_size not a multiple of 128 (needs a
        # head-major [nh, T, hd] fallback layout instead of lane-dense blocks).
        assert self.head_size % 128 == 0, "lane-dense layout needs head_size % 128 == 0"
        self.rotary_ndims = int(self.head_size * rotary_pct)
        self.rotary_emb_base = rotary_emb_base
        self.softmax_scale = self.head_size ** (-0.5)
        # v6e/v7x-friendly defaults; v5e is happy with 128x128 (min'd by T anyway)
        self.attn_block_q = attn_block_q
        self.attn_block_k = attn_block_k
        self.mm_blocks = dict(block_m=mm_block_m, block_n=mm_block_n,
                              block_k=mm_block_k)

        k1, k2, k3, k4 = jax.random.split(key, 4)
        # nn.Linear weight is [out, in]; store the transpose [in, out] in bf16
        # once at init (no per-call cast / extra HBM pass over the weights).
        # The 3H axis is ordered (3, num_heads, head_size) (shuffled layout).
        self.w_qkv = (0.02 * jax.random.normal(
            k1, (3 * hidden_size, hidden_size), jnp.float32)).T.astype(jnp.bfloat16)
        self.b_qkv = 0.02 * jax.random.normal(k2, (3 * hidden_size,), jnp.float32)
        self.w_dense = (0.02 * jax.random.normal(
            k3, (hidden_size, hidden_size), jnp.float32)).T.astype(jnp.bfloat16)
        self.b_dense = 0.02 * jax.random.normal(k4, (hidden_size,), jnp.float32)

    def get_cos_sin(self, position_ids):
        rot = self.rotary_ndims
        inv_freq = 1.0 / (self.rotary_emb_base
                          ** (jnp.arange(0, rot, 2, dtype=jnp.float32) / rot))
        freqs = position_ids.astype(jnp.float32)[:, None] * inv_freq[None, :]
        return jnp.cos(freqs), jnp.sin(freqs)          # [T, rot//2] each

    def __call__(self, hidden_states, cos, sin, cu_seqlens, max_s, layer_past,
                 layer_past_present_indices, cu_seqlens_q):
        T = hidden_states.shape[0]
        nh, hd, H = self.num_heads, self.head_size, self.hidden_size

        qkv = linear(hidden_states, self.w_qkv, self.b_qkv,
                     out_dtype=jnp.bfloat16, **self.mm_blocks)            # [T, 3H] bf16
        # TODO(synk): fuse rotary into the QKV-linear epilogue to drop the
        # q_rot/k_rot HBM round trip entirely.
        q_rot, k_rot = apply_rotary(qkv, cos, sin, nh, hd,
                                    q_scale=self.softmax_scale)           # bf16 [T,H] x2

        if layer_past_present_indices is None:
            # prefill: layer_past[...] = qkv[:, 1:]  (post-rotary k, and v)
            v2d = qkv[:, 2 * H:]                      # only for the layer_past output
            new_layer_past = jnp.stack(
                [k_rot.reshape(T, nh, hd), v2d.reshape(T, nh, hd)],
                axis=1).astype(layer_past.dtype)

            # Packed varlen layout => per-token sequence starts are non-decreasing
            # within a q tile (required by the per-tile min/max start tables).
            seg_ids = jnp.searchsorted(cu_seqlens[1:],
                                       jnp.arange(T, dtype=cu_seqlens.dtype),
                                       side="right")
            seq_start = cu_seqlens[seg_ids].astype(jnp.int32)
            bq = _fit_tile(self.attn_block_q, T)
            bk = _fit_tile(self.attn_block_k, T)
            tile_min_start = seq_start[::bq]           # first row of each q tile
            tile_max_start = seq_start[bq - 1::bq]     # last row of each q tile

            attn = flash_attention(
                q_rot, k_rot, qkv, seq_start, tile_min_start, tile_max_start,
                num_heads=nh, head_size=hd, block_q=bq, block_k=bk)       # bf16 [T,H]
        else:
            # TODO(synk): decode path (single-token queries over the scattered
            # KV cache via layer_past_present_indices) not implemented.
            raise NotImplementedError("decode path not implemented")

        out = linear(attn, self.w_dense, self.b_dense,
                     out_dtype=jnp.float32, **self.mm_blocks)             # f32 [T,H]
        return out, new_layer_past


# ---------------------------------------------------------------------------
# Pure-JAX f32 reference (for correctness check)
# ---------------------------------------------------------------------------
def reference_forward(mod, hidden_states, cos, sin, cu_seqlens):
    T = hidden_states.shape[0]
    nh, hd = mod.num_heads, mod.head_size
    w_qkv = mod.w_qkv.astype(jnp.float32)
    w_dense = mod.w_dense.astype(jnp.float32)
    qkv = hidden_states @ w_qkv + mod.b_qkv
    qkv = qkv.reshape(T, 3, nh, hd)
    q, k, v = qkv[:, 0], qkv[:, 1], qkv[:, 2]

    rot = mod.rotary_ndims
    half = rot // 2
    c = cos[:, None, :]
    s = sin[:, None, :]

    def rotate(x):
        x1 = x[..., :half]
        x2 = x[..., half:rot]
        o1 = x1 * c - x2 * s
        o2 = x2 * c + x1 * s
        if rot < hd:
            return jnp.concatenate([o1, o2, x[..., rot:]], axis=-1)
        return jnp.concatenate([o1, o2], axis=-1)

    q, k = rotate(q), rotate(k)
    seg = jnp.searchsorted(cu_seqlens[1:], jnp.arange(T, dtype=cu_seqlens.dtype),
                           side="right")
    scores = jnp.einsum("tnd,snd->nts", q, k) * mod.softmax_scale
    mask = (seg[:, None] == seg[None, :]) & (
        jnp.arange(T)[None, :] <= jnp.arange(T)[:, None])
    scores = jnp.where(mask[None], scores, -1e30)
    p = jax.nn.softmax(scores, axis=-1)
    attn = jnp.einsum("nts,snd->tnd", p, v)
    out = attn.reshape(T, nh * hd) @ w_dense + mod.b_dense
    layer_past = jnp.stack([k, v], axis=1)
    return out, layer_past


# ---------------------------------------------------------------------------
if __name__ == "__main__":
    num_heads, hidden_size = 2, 256                 # head_size = 128
    rotary_pct, rotary_emb_base = 0.25, 10000

    root = jax.random.PRNGKey(0)
    k_w, k_x1, k_x2 = jax.random.split(root, 3)
    mod = FlashNeoxAttentionPallas(
        num_heads, hidden_size, rotary_pct, rotary_emb_base, k_w,
        attn_block_q=16, attn_block_k=16, mm_block_k=128)

    def run_case(key, seq_lens):
        T = sum(seq_lens)
        max_s = max(seq_lens)
        hidden_states = jax.random.normal(key, (T, hidden_size), jnp.float32)
        cu_seqlens = jnp.array([0] + list(np.cumsum(seq_lens)), jnp.int32)
        position_ids = jnp.concatenate(
            [jnp.arange(l, dtype=jnp.int32) for l in seq_lens])
        cos, sin = mod.get_cos_sin(position_ids)
        layer_past = jnp.zeros((T, 2, num_heads, hidden_size // num_heads),
                               jnp.float32)

        out, new_past = mod(hidden_states, cos, sin, cu_seqlens, max_s,
                            layer_past=layer_past,
                            layer_past_present_indices=None, cu_seqlens_q=None)
        out = jax.block_until_ready(out)
        new_past = jax.block_until_ready(new_past)

        ref_out, ref_past = reference_forward(mod, hidden_states, cos, sin,
                                              cu_seqlens)
        assert out.shape == (T, hidden_size)
        assert new_past.shape == (T, 2, num_heads, hidden_size // num_heads)
        err_out = np.abs(np.asarray(out, np.float32) - np.asarray(ref_out)).max()
        err_past = np.abs(np.asarray(new_past, np.float32)
                          - np.asarray(ref_past)).max()
        assert np.allclose(np.asarray(out, np.float32), np.asarray(ref_out),
                           rtol=5e-2, atol=1.5e-2), err_out
        assert np.allclose(np.asarray(new_past, np.float32), np.asarray(ref_past),
                           rtol=5e-2, atol=1.5e-2), err_past

    # ragged varlen prefill: exercises causal + segment tile skipping
    run_case(k_x1, [9, 7, 16])
    # single long sequence: exercises the unmasked fast path
    run_case(k_x2, [64])
    print("KERNEL_OK")
</pallas_src>

<mosaic_0001>
module attributes {stable_mosaic.version = 11 : i64} {
  func.func @_linear_kernel(%arg0: i32, %arg1: i32, %arg2: i32, %arg3: memref<32x128xbf16, #tpu.memory_space<vmem>>, %arg4: memref<128x256xbf16, #tpu.memory_space<vmem>>, %arg5: memref<1x256xf32, #tpu.memory_space<vmem>>, %arg6: memref<32x256xbf16, #tpu.memory_space<vmem>>, %arg7: memref<32x256xf32, #tpu.memory_space<vmem>>) attributes {dimension_semantics = [#tpu.dimension_semantics<parallel>, #tpu.dimension_semantics<parallel>, #tpu.dimension_semantics<arbitrary>], iteration_bounds = array<i64: 1, 3, 2>, scalar_prefetch = 0 : i64, scratch_operands = 1 : i64, tpu.core_type = #tpu.core_type<tc>, window_params = [{transform_indices = @transform_0, window_bounds = array<i64: 32, 128>}, {transform_indices = @transform_1, window_bounds = array<i64: 128, 256>}, {transform_indices = @transform_2, window_bounds = array<i64: 1, 256>}, {transform_indices = @transform_3, window_bounds = array<i64: 32, 256>}]} {
    %c0_i32 = arith.constant 0 : i32
    %0 = arith.cmpi eq, %arg2, %c0_i32 : i32
    %1 = arith.extui %0 : i1 to i32
    %c0_i32_0 = arith.constant 0 : i32
    %2 = arith.cmpi ne, %1, %c0_i32_0 : i32
    scf.if %2 {
      %cst_9 = arith.constant 0.000000e+00 : f32
      %12 = vector.broadcast %cst_9 : f32 to vector<32x256xf32>
      %c0_10 = arith.constant 0 : index
      %c0_11 = arith.constant 0 : index
      %13 = vector.load %arg5[%c0_10, %c0_11] : memref<1x256xf32, #tpu.memory_space<vmem>>, vector<1x256xf32>
      %14 = vector.broadcast %13 : vector<1x256xf32> to vector<32x256xf32>
      %15 = arith.addf %12, %14 : vector<32x256xf32>
      %c0_12 = arith.constant 0 : index
      %c0_13 = arith.constant 0 : index
      %16 = vector.load %arg7[%c0_12, %c0_13] : memref<32x256xf32, #tpu.memory_space<vmem>>, vector<32x256xf32>
      tpu.vector_store %arg7[%c0_12, %c0_13], %15 {strides = array<i32>} : memref<32x256xf32, #tpu.memory_space<vmem>>, vector<32x256xf32>,
    } else {
    }
    %c0 = arith.constant 0 : index
    %c0_1 = arith.constant 0 : index
    %3 = vector.load %arg7[%c0, %c0_1] : memref<32x256xf32, #tpu.memory_space<vmem>>, vector<32x256xf32>
    %c0_2 = arith.constant 0 : index
    %c0_3 = arith.constant 0 : index
    %4 = vector.load %arg3[%c0_2, %c0_3] : memref<32x128xbf16, #tpu.memory_space<vmem>>, vector<32x128xbf16>
    %c0_4 = arith.constant 0 : index
    %c0_5 = arith.constant 0 : index
    %5 = vector.load %arg4[%c0_4, %c0_5] : memref<128x256xbf16, #tpu.memory_space<vmem>>, vector<128x256xbf16>
    %cst = arith.constant dense<0.000000e+00> : vector<32x256xf32>
    %6 = tpu.matmul %4, %5, %cst {dimension_numbers = #tpu.dot_dimension_numbers<[1], [0], [0], [1], [0, 0, 1, 1], [], []>} : vector<32x128xbf16>, vector<128x256xbf16>, vector<32x256xf32> -> vector<32x256xf32>
    %7 = arith.addf %3, %6 : vector<32x256xf32>
    %c0_6 = arith.constant 0 : index
    %c0_7 = arith.constant 0 : index
    %8 = vector.load %arg7[%c0_6, %c0_7] : memref<32x256xf32, #tpu.memory_space<vmem>>, vector<32x256xf32>
    tpu.vector_store %arg7[%c0_6, %c0_7], %7 {strides = array<i32>} : memref<32x256xf32, #tpu.memory_space<vmem>>, vector<32x256xf32>,
    %c1_i32 = arith.constant 1 : i32
    %9 = arith.cmpi eq, %arg2, %c1_i32 : i32
    %10 = arith.extui %9 : i1 to i32
    %c0_i32_8 = arith.constant 0 : i32
    %11 = arith.cmpi ne, %10, %c0_i32_8 : i32
    scf.if %11 {
      %c0_9 = arith.constant 0 : index
      %c0_10 = arith.constant 0 : index
      %12 = vector.load %arg7[%c0_9, %c0_10] : memref<32x256xf32, #tpu.memory_space<vmem>>, vector<32x256xf32>
      %13 = arith.truncf %12 : vector<32x256xf32> to vector<32x256xbf16>
      %c0_11 = arith.constant 0 : index
      %c0_12 = arith.constant 0 : index
      %14 = vector.load %arg6[%c0_11, %c0_12] : memref<32x256xbf16, #tpu.memory_space<vmem>>, vector<32x256xbf16>
      tpu.vector_store %arg6[%c0_11, %c0_12], %13 {strides = array<i32>} : memref<32x256xbf16, #tpu.memory_space<vmem>>, vector<32x256xbf16>,
    } else {
    }
    return
  }
  func.func @transform_0(%arg0: i32, %arg1: i32, %arg2: i32) -> (i32, i32) {
    %c0_i32 = arith.constant 0 : i32
    return %arg0, %arg2 : i32, i32
  }
  func.func @transform_1(%arg0: i32, %arg1: i32, %arg2: i32) -> (i32, i32) {
    %c0_i32 = arith.constant 0 : i32
    return %arg2, %arg1 : i32, i32
  }
  func.func @transform_2(%arg0: i32, %arg1: i32, %arg2: i32) -> (i32, i32) {
    %c0_i32 = arith.constant 0 : i32
    %c0_i32_0 = arith.constant 0 : i32
    return %c0_i32, %arg1 : i32, i32
  }
  func.func @transform_3(%arg0: i32, %arg1: i32, %arg2: i32) -> (i32, i32) {
    %c0_i32 = arith.constant 0 : i32
    return %arg0, %arg1 : i32, i32
  }
}

</mosaic_0001>

<llo_original>
// kernel: tpu_custom_call.1
$region0: #{tpu_custom_call.1}
  #allocation0 [shape = 'u32[]', space=smem, size = 0x4, offset = 0x4, fixed_abs, tag = 'smem constant byte address 0x4 - core index']
  #allocation1 [shape = 'u32[144,128]{1,0:T(1,128)}', space=vmem, size = 0x12000, scoped, tag = 'internal scratch']
  #allocation2 [shape = 'f32[32,256]{1,0:T(8,128)}', space=vmem, size = 0x8000, scoped, tag = 'scratch operand']
  %s0 = inlined_call_operand.hbm [shape: bf16[32,256], index: 0, kind: input, shape index: {}]
  %s1 = inlined_call_operand.hbm [shape: bf16[256,768], index: 1, kind: input, shape index: {}]
  %s2 = inlined_call_operand.vmem [shape: f32[1,768], index: 2, kind: input, shape index: {}]
  %s3 = inlined_call_operand.hbm [shape: bf16[32,768], index: 3, kind: output, shape index: {}]
  %s4 = sld [smem:[#allocation0]]
  $region61: #{tpu_custom_call.1} parent=0
    _
  %s6 = ssub.s32 1, %s4
  %s7 = scalar_select 0, %s6, %s4
  $region1: #{tpu_custom_call.1} parent=0
    #allocation3 [shape = 'u8[16384]{0}', space=vmem, size = 0x4000, scoped, tag = 'input window, operand 0']
    #allocation4 [shape = 's32[2]{0}', space=sflag, size = 0x8, scoped, tag = 'scoped memory for tpu_custom_call.1']
    #allocation5 [shape = 's32[2]{0}', space=sflag, size = 0x8, scoped, tag = 'scoped memory for tpu_custom_call.1']
    #allocation6 [shape = 'u8[131072]{0}', space=vmem, size = 0x20000, scoped, tag = 'input window, operand 1']
    #allocation7 [shape = 's32[2]{0}', space=sflag, size = 0x8, scoped, tag = 'scoped memory for tpu_custom_call.1']
    #allocation8 [shape = 'u8[32768]{0}', space=vmem, size = 0x8000, scoped, tag = 'output window, operand 0']
    %8 = vsyncpa [#allocation4], 0
    %s9 = scalar_lea.sflag [#allocation4], 1
    %10 = vsyncpa %s9, 0
    %11 = vsyncpa [#allocation7], 0
    %s12 = scalar_lea.sflag [#allocation7], 1
    %13 = vsyncpa %s12, 0
    %14 = vsyncpa [#allocation5], 0
    %s15 = scalar_lea.sflag [#allocation5], 1
    %16 = vsyncpa %s15, 0
    loop: start=0, step=1, limit=8
    $region2: #{tpu_custom_call.1} parent=1 // loop_pre_header
      _
    $region3: #{tpu_custom_call.1} parent=1 // loop_header
      %s18 = sphi 0, %s22
      %p19 = scmp.ge.s32.totalorder %s18, 8
      %s25 = sphi 0, %s44
      %s26 = sphi 0, %s40
      %s27 = sphi 0, %s36
      %s28 = sphi 0, %s25
      %s29 = sphi 0, %s26
      %s30 = sphi 0, %s27
      %s31 = sphi 0, %s28
      %s32 = sphi 0, %s29
      %s33 = sphi 0, %s30
      %s49 = sphi 0, %s51
      %s52 = sphi 0, %s49
      %s53 = sphi 0, %s52
      %s69 = sphi 0, %s53
      %s77 = sphi 0, %s79
      %s80 = sphi 0, %s77
      %s81 = sphi 0, %s80
      %s97 = sphi 0, %s81
      %s103 = sphi 0, %s105
      %s106 = sphi 0, %s103
      %s107 = sphi 0, %s106
      %s123 = sphi 0, %s107
      %s131 = sphi 0, %s133
      %s134 = sphi 0, %s131
      %s135 = sphi 0, %s134
      %s151 = sphi 0, %s135
    $region4: #{tpu_custom_call.1} parent=1 // loop_header_branch
      %21 = sbr.rel (%p19) target = $region8
    $region5: #{tpu_custom_call.1} parent=1 // loop_body
      %s23 = ssub.s32 %s18, 1
      %s24 = ssub.s32 %s18, 2
      %s34 = sadd.s32 1, %s27
      %p35 = scmp.ge.s32.totalorder %s34, 2
      %s36 = scalar_select %p35, 0, %s34
      %s37 = sadd.s32 1, %s26
      %s38 = scalar_select %p35, %s37, %s26
      %p39 = scmp.ge.s32.totalorder %s38, 3
      %s40 = scalar_select %p39, 0, %s38
      %s41 = sadd.s32 1, %s25
      %s42 = scalar_select %p39, %s41, %s25
      %p43 = scmp.ge.s32.totalorder %s42, 1
      %s44 = scalar_select %p43, 0, %s42
      %s45 = ssub.s32 %s25, %s44
      %s46 = ssub.s32 %s27, %s36
      %s47 = sor.u32 %s45, %s46
      %p48 = scmp.eq.s32.totalorder %s47, 0
      %s50 = sadd.s32 %s49, 1
      %s51 = scalar_select %p48, %s49, %s50
      %p54 = pneg %p48
      %p55 = scmp.eq.s32.totalorder %s18, 5
      %p56 = por %p54, %p55
      %p57 = scmp.ne.s32.totalorder %s49, %s52
      %p58 = scmp.eq.s32.totalorder %s18, 0
      %p59 = por %p57, %p58
      %p60 = scmp.ne.s32.totalorder %s49, %s52
      %p61 = scmp.eq.s32.totalorder %s23, 5
      %p62 = por %p60, %p61
      %p63 = scmp.ne.s32.totalorder %s52, %s53
      %p64 = scmp.eq.s32.totalorder %s23, 0
      %p65 = por %p63, %p64
      %p66 = scmp.ne.s32.totalorder %s52, %s53
      %p67 = scmp.eq.s32.totalorder %s24, 5
      %p68 = por %p66, %p67
      %p70 = scmp.ne.s32.totalorder %s53, %s69
      %p71 = scmp.eq.s32.totalorder %s24, 0
      %p72 = por %p70, %p71
      %s73 = ssub.s32 %s27, %s36
      %s74 = ssub.s32 %s26, %s40
      %s75 = sor.u32 %s73, %s74
      %p76 = scmp.eq.s32.totalorder %s75, 0
      %s78 = sadd.s32 %s77, 1
      %s79 = scalar_select %p76, %s77, %s78
      %p82 = pneg %p76
      %p83 = scmp.eq.s32.totalorder %s18, 5
      %p84 = por %p82, %p83
      %p85 = scmp.ne.s32.totalorder %s77, %s80
      %p86 = scmp.eq.s32.totalorder %s18, 0
      %p87 = por %p85, %p86
      %p88 = scmp.ne.s32.totalorder %s77, %s80
      %p89 = scmp.eq.s32.totalorder %s23, 5
      %p90 = por %p88, %p89
      %p91 = scmp.ne.s32.totalorder %s80, %s81
      %p92 = scmp.eq.s32.totalorder %s23, 0
      %p93 = por %p91, %p92
      %p94 = scmp.ne.s32.totalorder %s80, %s81
      %p95 = scmp.eq.s32.totalorder %s24, 5
      %p96 = por %p94, %p95
      %p98 = scmp.ne.s32.totalorder %s81, %s97
      %p99 = scmp.eq.s32.totalorder %s24, 0
      %p100 = por %p98, %p99
      %s101 = ssub.s32 %s26, %s40
      %p102 = scmp.eq.s32.totalorder %s101, 0
      %s104 = sadd.s32 %s103, 1
      %s105 = scalar_select %p102, %s103, %s104
      %p108 = pneg %p102
      %p109 = scmp.eq.s32.totalorder %s18, 5
      %p110 = por %p108, %p109
      %p111 = scmp.ne.s32.totalorder %s103, %s106
      %p112 = scmp.eq.s32.totalorder %s18, 0
      %p113 = por %p111, %p112
      %p114 = scmp.ne.s32.totalorder %s103, %s106
      %p115 = scmp.eq.s32.totalorder %s23, 5
      %p116 = por %p114, %p115
      %p117 = scmp.ne.s32.totalorder %s106, %s107
      %p118 = scmp.eq.s32.totalorder %s23, 0
      %p119 = por %p117, %p118
      %p120 = scmp.ne.s32.totalorder %s106, %s107
      %p121 = scmp.eq.s32.totalorder %s24, 5
      %p122 = por %p120, %p121
      %p124 = scmp.ne.s32.totalorder %s107, %s123
      %p125 = scmp.eq.s32.totalorder %s24, 0
      %p126 = por %p124, %p125
      %s127 = ssub.s32 %s25, %s44
      %s128 = ssub.s32 %s26, %s40
      %s129 = sor.u32 %s127, %s128
      %p130 = scmp.eq.s32.totalorder %s129, 0
      %s132 = sadd.s32 %s131, 1
      %s133 = scalar_select %p130, %s131, %s132
      %p136 = pneg %p130
      %p137 = scmp.eq.s32.totalorder %s18, 5
      %p138 = por %p136, %p137
      %p139 = scmp.ne.s32.totalorder %s131, %s134
      %p140 = scmp.eq.s32.totalorder %s18, 0
      %p141 = por %p139, %p140
      %p142 = scmp.ne.s32.totalorder %s131, %s134
      %p143 = scmp.eq.s32.totalorder %s23, 5
      %p144 = por %p142, %p143
      %p145 = scmp.ne.s32.totalorder %s134, %s135
      %p146 = scmp.eq.s32.totalorder %s23, 0
      %p147 = por %p145, %p146
      %p148 = scmp.ne.s32.totalorder %s134, %s135
      %p149 = scmp.eq.s32.totalorder %s24, 5
      %p150 = por %p148, %p149
      %p152 = scmp.ne.s32.totalorder %s135, %s151
      %p153 = scmp.eq.s32.totalorder %s24, 0
      %p154 = por %p152, %p153
      %p155 = scmp.le.s32.totalorder 1, %s18
      %p156 = scmp.lt.s32.totalorder %s18, 7
      %p157 = pnand %p155, %p156
      %p158 = pneg %p157
      // Predicated region
      $region9: #{tpu_custom_call.1} parent=5 // pred_check
        _
      $region10: #{tpu_custom_call.1} parent=5 // pred_check_branch
        %160 = sbr.rel (%p157) target = $region12
      $region11: #{tpu_custom_call.1} parent=5 // pred_region
        %s161 = ssub.s32 %s18, 1
      $region12: #{tpu_custom_call.1} parent=5 // pred_fallthru
        _
      %p162 = scmp.lt.s32.totalorder %s18, 6
      // Predicated region
      $region13: #{tpu_custom_call.1} parent=5 // pred_check
        %p163 = pneg %p162
      $region14: #{tpu_custom_call.1} parent=5 // pred_check_branch
        %165 = sbr.rel (%p163) target = $region16
      $region15: #{tpu_custom_call.1} parent=5 // pred_region
        // Predicated region
        $region17: #{tpu_custom_call.1} parent=15 // pred_check
          %p166 = pneg %p59
        $region18: #{tpu_custom_call.1} parent=15 // pred_check_branch
          %168 = sbr.rel (%p166) target = $region20
        $region19: #{tpu_custom_call.1} parent=15 // pred_region
          %s169 = sand.u32 %s49, 1
          %s170 = scalar_lea.sflag [#allocation4], %s169
          %s171 = sand.u32 %s49, 1
          %s172 = smul.addr %s171, 16
          %s173 = scalar_lea.vmem [#allocation3], %s172
          %s174 = smul.u32 4, %s25
          %s176 = ssub.s32 256, 256
          %177 = vsyncadd %s170, %s176
          %s178 = smul.addr %s174, 2
          %s179 = sadd.s32 %s27, %s178
          %s180 = smul.addr %s179, 64
          %s181 = scalar_lea.hbm %s0, %s180
          %s182 = sshll.u32 %s173, 4
          %s183 = int_to_ptr.vmem [resolvable:$true] %s182
          %188 = dma.hbm_to_vmem [thread:$0]  %s181, 256, %s183, %s170, 128, 64, 4
        $region20: #{tpu_custom_call.1} parent=15 // pred_fallthru
          _
        // Predicated region
        $region21: #{tpu_custom_call.1} parent=15 // pred_check
          %p189 = pneg %p87
        $region22: #{tpu_custom_call.1} parent=15 // pred_check_branch
          %191 = sbr.rel (%p189) target = $region24
        $region23: #{tpu_custom_call.1} parent=15 // pred_region
          %s192 = sand.u32 %s77, 1
          %s193 = scalar_lea.sflag [#allocation7], %s192
          %s194 = sand.u32 %s77, 1
          %s195 = smul.addr %s194, 128
          %s196 = scalar_lea.vmem [#allocation6], %s195
          %s197 = smul.u32 16, %s27
          %s198 = smul.u32 2, %s26
          %s200 = ssub.s32 2048, 2048
          %201 = vsyncadd %s193, %s200
          %s202 = smul.addr %s197, 6
          %s203 = sadd.s32 %s198, %s202
          %s204 = smul.addr %s203, 64
          %s205 = scalar_lea.hbm %s1, %s204
          %s206 = sshll.u32 %s196, 4
          %s207 = int_to_ptr.vmem [resolvable:$true] %s206
          %212 = dma.hbm_to_vmem [thread:$0]  %s205, 2048, %s207, %s193, 384, 128, 8
        $region24: #{tpu_custom_call.1} parent=15 // pred_fallthru
          _
        // Predicated region
        $region25: #{tpu_custom_call.1} parent=15 // pred_check
          %p213 = pneg %p113
        $region26: #{tpu_custom_call.1} parent=15 // pred_check_branch
          %215 = sbr.rel (%p213) target = $region28
        $region27: #{tpu_custom_call.1} parent=15 // pred_region
          %s216 = smul.u32 2, %s26
          %p217 = scmp.lt.s32.totalorder %s216, 5
          %s218 = scalar_select %p217, %s216, 5
          %s219 = scalar_lea.vmem %s2, %s218
          %s220 = smul.u32 2, %s26
        $region28: #{tpu_custom_call.1} parent=15 // pred_fallthru
          _
      $region16: #{tpu_custom_call.1} parent=5 // pred_fallthru
        _
      %p221 = scmp.le.s32.totalorder 1, %s18
      %p222 = scmp.lt.s32.totalorder %s18, 7
      %p223 = pnand %p221, %p222
      %p224 = pneg %p223
      // Predicated region
      $region29: #{tpu_custom_call.1} parent=5 // pred_check
        _
      $region30: #{tpu_custom_call.1} parent=5 // pred_check_branch
        %226 = sbr.rel (%p223) target = $region32
      $region31: #{tpu_custom_call.1} parent=5 // pred_region
        %s227 = ssub.s32 %s18, 1
        %s228 = sand.u32 %s52, 1
        %s229 = scalar_lea.sflag [#allocation4], %s228
        %s230 = sand.u32 %s52, 1
        %s231 = smul.addr %s230, 16
        %s232 = scalar_lea.vmem [#allocation3], %s231
        // Predicated region
        $region33: #{tpu_custom_call.1} parent=31 // pred_check
          %p233 = pneg %p65
        $region34: #{tpu_custom_call.1} parent=31 // pred_check_branch
          %235 = sbr.rel (%p233) target = $region36
        $region35: #{tpu_custom_call.1} parent=31 // pred_region
          %236 = dma.done %s229, 256
        $region36: #{tpu_custom_call.1} parent=31 // pred_fallthru
          _
        %s237 = sand.u32 %s80, 1
        %s238 = scalar_lea.sflag [#allocation7], %s237
        %s239 = sand.u32 %s80, 1
        %s240 = smul.addr %s239, 128
        %s241 = scalar_lea.vmem [#allocation6], %s240
        // Predicated region
        $region37: #{tpu_custom_call.1} parent=31 // pred_check
          %p242 = pneg %p93
        $region38: #{tpu_custom_call.1} parent=31 // pred_check_branch
          %244 = sbr.rel (%p242) target = $region40
        $region39: #{tpu_custom_call.1} parent=31 // pred_region
          %245 = dma.done %s238, 2048
        $region40: #{tpu_custom_call.1} parent=31 // pred_fallthru
          _
        %s246 = sand.u32 %s52, 1
        %s247 = scalar_lea.sflag [#allocation4], %s246
        %s248 = sand.u32 %s52, 1
        %s249 = smul.addr %s248, 16
        %s250 = scalar_lea.vmem [#allocation3], %s249
        %p251 = pneg %p65
        %p252 = pneg %p62
        %s253 = sand.u32 %s80, 1
        %s254 = scalar_lea.sflag [#allocation7], %s253
        %s255 = sand.u32 %s80, 1
        %s256 = smul.addr %s255, 128
        %s257 = scalar_lea.vmem [#allocation6], %s256
        %p258 = pneg %p93
        %p259 = pneg %p90
        %s260 = smul.u32 2, %s29
        %p261 = scmp.lt.s32.totalorder %s260, 5
        %s262 = scalar_select %p261, %s260, 5
        %s263 = scalar_lea.vmem %s2, %s262
        %p264 = pneg %p119
        %p265 = pneg %p116
        %p266 = pneg %p147
        %p267 = pneg %p144
        %s268 = sand.u32 %s134, 1
        %s269 = scalar_lea.sflag [#allocation5], %s268
        %s270 = sand.u32 %s134, 1
        %s271 = smul.addr %s270, 32
        %s272 = scalar_lea.vmem [#allocation8], %s271
        %s273 = smul.u32 4, %s28
        %s274 = smul.u32 16, %s30
        %s275 = smul.u32 2, %s29
        %s276 = smul.u32 2, %s29
        %p277 = scmp.lt.s32.totalorder %s276, 5
        %s278 = scalar_select %p277, %s276, 5
        %s279 = scalar_lea.vmem %s2, %s278
        %s280 = smul.u32 2, %s29
        %s281 = smul.u32 4, %s28
        %s282 = smul.u32 2, %s29
        %p284 = scmp.eq.s32.totalorder %s30, 0
        // Predicated region
        $region41: #{tpu_custom_call.1} parent=31 // pred_check
          %p285 = pneg %p284
        $region42: #{tpu_custom_call.1} parent=31 // pred_check_branch
          %287 = sbr.rel (%p285) target = $region44
        $region43: #{tpu_custom_call.1} parent=31 // pred_region
          %v288 = vld [vmem:[%s279] sm:$0x3]
          %v290 = vlaneseq
          %v291 = vshrl.u32 %v290, 7
          %v292 = vsub.s32 0, %v291
          %v293 = vrot.slane %v288, %v292
          %v294 = vlaneseq
          %v295 = vshrl.u32 %v294, 7
          %v296 = vsub.s32 1, %v295
          %v297 = vrot.slane %v288, %v296
          %v300 = vadd.f32 %v293, 0.0
          %v301 = vadd.f32 %v297, 0.0
          %302 = vst [vmem:[#allocation2] sm:$0xff] %v300
          %303 = vst [vmem:[#allocation2 + $0x8] sm:$0xff] %v301
          %304 = vst [vmem:[#allocation2 + $0x10] sm:$0xff] %v300
          %305 = vst [vmem:[#allocation2 + $0x18] sm:$0xff] %v301
          %306 = vst [vmem:[#allocation2 + $0x20] sm:$0xff] %v300
          %307 = vst [vmem:[#allocation2 + $0x28] sm:$0xff] %v301
          %308 = vst [vmem:[#allocation2 + $0x30] sm:$0xff] %v300
          %309 = vst [vmem:[#allocation2 + $0x38] sm:$0xff] %v301
        $region44: #{tpu_custom_call.1} parent=31 // pred_fallthru
          _
        %v310 = vld [vmem:[#allocation2] sm:$0xff]
        %v311 = vld [vmem:[#allocation2 + $0x8] sm:$0xff]
        %v312 = vld [vmem:[#allocation2 + $0x10] sm:$0xff]
        %v313 = vld [vmem:[#allocation2 + $0x18] sm:$0xff]
        %v314 = vld [vmem:[#allocation2 + $0x20] sm:$0xff]
        %v315 = vld [vmem:[#allocation2 + $0x28] sm:$0xff]
        %v316 = vld [vmem:[#allocation2 + $0x30] sm:$0xff]
        %v317 = vld [vmem:[#allocation2 + $0x38] sm:$0xff]
        %v318 = vld [vmem:[%s232] sm:$0xf]
        %v319 = vld [vmem:[%s232 + $0x4] sm:$0xf]
        %v320 = vld [vmem:[%s232 + $0x8] sm:$0xf]
        %v321 = vld [vmem:[%s232 + $0xc] sm:$0xf]
        %v322 = vld [vmem:[%s241] sm:$0xff]
        %v323 = vld [vmem:[%s241 + $0x8] sm:$0xff]
        %v324 = vld [vmem:[%s241 + $0x10] sm:$0xff]
        %v325 = vld [vmem:[%s241 + $0x18] sm:$0xff]
        %v326 = vld [vmem:[%s241 + $0x20] sm:$0xff]
        %v327 = vld [vmem:[%s241 + $0x28] sm:$0xff]
        %v328 = vld [vmem:[%s241 + $0x30] sm:$0xff]
        %v329 = vld [vmem:[%s241 + $0x38] sm:$0xff]
        %v330 = vld [vmem:[%s241 + $0x40] sm:$0xff]
        %v331 = vld [vmem:[%s241 + $0x48] sm:$0xff]
        %v332 = vld [vmem:[%s241 + $0x50] sm:$0xff]
        %v333 = vld [vmem:[%s241 + $0x58] sm:$0xff]
        %v334 = vld [vmem:[%s241 + $0x60] sm:$0xff]
        %v335 = vld [vmem:[%s241 + $0x68] sm:$0xff]
        %v336 = vld [vmem:[%s241 + $0x70] sm:$0xff]
        %v337 = vld [vmem:[%s241 + $0x78] sm:$0xff]
        %v342 = vunpack.c.l.b16 %v318
        %v343 = vunpack.c.l.b16 %v319
        %v344 = vunpack.c.l.b16 %v320
        %v345 = vunpack.c.l.b16 %v321
        %v346 = vpack.c.b16 %v343, %v342
        %v347 = vpack.c.b16 %v345, %v344
        %v366 = vunpack.c.l.b16 %v322
        %v367 = vunpack.c.h.b16 %v322
        %v368 = vunpack.c.l.b16 %v323
        %v369 = vunpack.c.h.b16 %v323
        %v370 = vunpack.c.l.b16 %v324
        %v371 = vunpack.c.h.b16 %v324
        %v372 = vunpack.c.l.b16 %v325
        %v373 = vunpack.c.h.b16 %v325
        %v374 = vunpack.c.l.b16 %v326
        %v375 = vunpack.c.h.b16 %v326
        %v376 = vunpack.c.l.b16 %v327
        %v377 = vunpack.c.h.b16 %v327
        %v378 = vunpack.c.l.b16 %v328
        %v379 = vunpack.c.h.b16 %v328
        %v380 = vunpack.c.l.b16 %v329
        %v381 = vunpack.c.h.b16 %v329
        %v382 = vunpack.c.l.b16 %v330
        %v383 = vunpack.c.h.b16 %v330
        %v384 = vunpack.c.l.b16 %v331
        %v385 = vunpack.c.h.b16 %v331
        %v386 = vunpack.c.l.b16 %v332
        %v387 = vunpack.c.h.b16 %v332
        %v388 = vunpack.c.l.b16 %v333
        %v389 = vunpack.c.h.b16 %v333
        %v390 = vunpack.c.l.b16 %v334
        %v391 = vunpack.c.h.b16 %v334
        %v392 = vunpack.c.l.b16 %v335
        %v393 = vunpack.c.h.b16 %v335
        %v394 = vunpack.c.l.b16 %v336
        %v395 = vunpack.c.h.b16 %v336
        %v396 = vunpack.c.l.b16 %v337
        %v397 = vunpack.c.h.b16 %v337
        %v398 = vpack.c.b16 %v368, %v366
        %v399 = vpack.c.b16 %v369, %v367
        %v400 = vpack.c.b16 %v372, %v370
        %v401 = vpack.c.b16 %v373, %v371
        %v402 = vpack.c.b16 %v376, %v374
        %v403 = vpack.c.b16 %v377, %v375
        %v404 = vpack.c.b16 %v380, %v378
        %v405 = vpack.c.b16 %v381, %v379
        %v406 = vpack.c.b16 %v384, %v382
        %v407 = vpack.c.b16 %v385, %v383
        %v408 = vpack.c.b16 %v388, %v386
        %v409 = vpack.c.b16 %v389, %v387
        %v410 = vpack.c.b16 %v392, %v390
        %v411 = vpack.c.b16 %v393, %v391
        %v412 = vpack.c.b16 %v396, %v394
        %v413 = vpack.c.b16 %v397, %v395
        %430 = vmatprep.subr.bf16.mxu0 %v399
        %431 = vmatpush1.bf16.msra.mxu0 %v398
        %432 = vmatprep.subr.bf16.mxu0 %v401
        %433 = vmatpush1.bf16.msra.mxu0 %v400
        %434 = vmatprep.subr.bf16.mxu0 %v403
        %435 = vmatpush1.bf16.msra.mxu0 %v402
        %436 = vmatprep.subr.bf16.mxu0 %v405
        %437 = vmatpush1.bf16.msra.mxu0 %v404
        %438 = vmatprep.subr.bf16.mxu0 %v407
        %439 = vmatpush1.bf16.msra.mxu0 %v406
        %440 = vmatprep.subr.bf16.mxu0 %v409
        %441 = vmatpush1.bf16.msra.mxu0 %v408
        %442 = vmatprep.subr.bf16.mxu0 %v411
        %443 = vmatpush1.bf16.msra.mxu0 %v410
        %444 = vmatprep.subr.bf16.mxu0 %v413
        %445 = vmatpush1.bf16.msra.mxu0 %v412
        %446 = vmatprep.subr.bf16.mxu0 0
        %447 = vmatpush1.bf16.msra.mxu0 0
        %448 = vmatprep.subr.bf16.mxu0 0
        %449 = vmatpush1.bf16.msra.mxu0 0
        %450 = vmatprep.subr.bf16.mxu0 0
        %451 = vmatpush1.bf16.msra.mxu0 0
        %452 = vmatprep.subr.bf16.mxu0 0
        %453 = vmatpush1.bf16.msra.mxu0 0
        %454 = vmatprep.subr.bf16.mxu0 0
        %455 = vmatpush1.bf16.msra.mxu0 0
        %456 = vmatprep.subr.bf16.mxu0 0
        %457 = vmatpush1.bf16.msra.mxu0 0
        %458 = vmatprep.subr.bf16.mxu0 0
        %459 = vmatpush1.bf16.msra.mxu0 0
        %460 = vmatprep.subr.bf16.mxu0 0
        %461 = vmatpush1.bf16.msra.mxu0 0
        %462 = vmatprep.mubr.bf16.mxu0 0
        %463 = vmatmul.mubr.bf16.gmra.mrb[0].mxu0 %v346
        %v464 = vpop.f32.mrb[0].mxu0
        %v465 = vadd.f32 0.0, %v464
        %v466 = vpop.f32.mrb[0].mxu0
        %v467 = vadd.f32 0.0, %v466
        %v468 = vpop.f32.mrb[0].mxu0
        %v469 = vadd.f32 0.0, %v468
        %v470 = vpop.f32.mrb[0].mxu0
        %v471 = vadd.f32 0.0, %v470
        %472 = vmatprep.mubr.bf16.mxu0 0
        %473 = vmatmul.mubr.bf16.gmra.mrb[0].mxu0 %v347
        %v474 = vpop.f32.mrb[0].mxu0
        %v475 = vadd.f32 0.0, %v474
        %v476 = vpop.f32.mrb[0].mxu0
        %v477 = vadd.f32 0.0, %v476
        %v478 = vpop.f32.mrb[0].mxu0
        %v479 = vadd.f32 0.0, %v478
        %v480 = vpop.f32.mrb[0].mxu0
        %v481 = vadd.f32 0.0, %v480
        %482 = vdwg.mxu0
        %v483 = vadd.f32 %v310, %v465
        %v484 = vadd.f32 %v311, %v467
        %v485 = vadd.f32 %v312, %v469
        %v486 = vadd.f32 %v313, %v471
        %v487 = vadd.f32 %v314, %v475
        %v488 = vadd.f32 %v315, %v477
        %v489 = vadd.f32 %v316, %v479
        %v490 = vadd.f32 %v317, %v481
        %491 = vst [vmem:[#allocation2] sm:$0xff] %v483
        %492 = vst [vmem:[#allocation2 + $0x8] sm:$0xff] %v484
        %493 = vst [vmem:[#allocation2 + $0x10] sm:$0xff] %v485
        %494 = vst [vmem:[#allocation2 + $0x18] sm:$0xff] %v486
        %495 = vst [vmem:[#allocation2 + $0x20] sm:$0xff] %v487
        %496 = vst [vmem:[#allocation2 + $0x28] sm:$0xff] %v488
        %497 = vst [vmem:[#allocation2 + $0x30] sm:$0xff] %v489
        %498 = vst [vmem:[#allocation2 + $0x38] sm:$0xff] %v490
        %p499 = scmp.eq.s32.totalorder %s30, 1
        // Predicated region
        $region45: #{tpu_custom_call.1} parent=31 // pred_check
          %p500 = pneg %p499
        $region46: #{tpu_custom_call.1} parent=31 // pred_check_branch
          %502 = sbr.rel (%p500) target = $region48
        $region47: #{tpu_custom_call.1} parent=31 // pred_region
          %v503 = vld [vmem:[#allocation2] sm:$0xff]
          %v504 = vld [vmem:[#allocation2 + $0x8] sm:$0xff]
          %v505 = vld [vmem:[#allocation2 + $0x10] sm:$0xff]
          %v506 = vld [vmem:[#allocation2 + $0x18] sm:$0xff]
          %v507 = vld [vmem:[#allocation2 + $0x20] sm:$0xff]
          %v508 = vld [vmem:[#allocation2 + $0x28] sm:$0xff]
          %v509 = vld [vmem:[#allocation2 + $0x30] sm:$0xff]
          %v510 = vld [vmem:[#allocation2 + $0x38] sm:$0xff]
          %v511 = vpack.c.bf16 %v505, %v503
          %v512 = vpack.c.bf16 %v506, %v504
          %v513 = vpack.c.bf16 %v509, %v507
          %v514 = vpack.c.bf16 %v510, %v508
          %v519 = vunpack.c.l.b16 %v511
          %v520 = vunpack.c.l.b16 %v512
          %v521 = vunpack.c.h.b16 %v511
          %v522 = vunpack.c.h.b16 %v512
          %v523 = vunpack.c.l.b16 %v513
          %v524 = vunpack.c.l.b16 %v514
          %v525 = vunpack.c.h.b16 %v513
          %v526 = vunpack.c.h.b16 %v514
          %v527 = vpack.c.b16 %v520, %v519
          %v528 = vpack.c.b16 %v522, %v521
          %v529 = vpack.c.b16 %v524, %v523
          %v530 = vpack.c.b16 %v526, %v525
          %535 = vst [vmem:[%s272] sm:$0xff] %v527
          %536 = vst [vmem:[%s272 + $0x8] sm:$0xff] %v528
          %537 = vst [vmem:[%s272 + $0x10] sm:$0xff] %v529
          %538 = vst [vmem:[%s272 + $0x18] sm:$0xff] %v530
        $region48: #{tpu_custom_call.1} parent=31 // pred_fallthru
          _
        %s539 = sand.u32 %s134, 1
        %s540 = scalar_lea.sflag [#allocation5], %s539
        %s541 = sand.u32 %s134, 1
        %s542 = smul.addr %s541, 32
        %s543 = scalar_lea.vmem [#allocation8], %s542
        // Predicated region
        $region49: #{tpu_custom_call.1} parent=31 // pred_check
          %p544 = pneg %p144
        $region50: #{tpu_custom_call.1} parent=31 // pred_check_branch
          %546 = sbr.rel (%p544) target = $region52
        $region51: #{tpu_custom_call.1} parent=31 // pred_region
          %s547 = smul.u32 4, %s28
          %s548 = smul.u32 2, %s29
          %s550 = ssub.s32 512, 512
          %551 = vsyncadd %s540, %s550
          %s552 = smul.addr %s547, 6
          %s553 = sadd.s32 %s548, %s552
          %s554 = smul.addr %s553, 64
          %s555 = scalar_lea.hbm %s3, %s554
          %s556 = sshll.u32 %s543, 4
          %s557 = int_to_ptr.vmem [resolvable:$true] %s556
          %562 = dma.vmem_to_hbm [thread:$0]  %s557, 512, %s555, %s540, 128, 384, 8
        $region52: #{tpu_custom_call.1} parent=31 // pred_fallthru
          _
      $region32: #{tpu_custom_call.1} parent=5 // pred_fallthru
        _
      %p563 = scmp.le.s32.totalorder 2, %s18
      // Predicated region
      $region53: #{tpu_custom_call.1} parent=5 // pred_check
        %p564 = pneg %p563
      $region54: #{tpu_custom_call.1} parent=5 // pred_check_branch
        %566 = sbr.rel (%p564) target = $region56
      $region55: #{tpu_custom_call.1} parent=5 // pred_region
        %s567 = ssub.s32 %s18, 2
        // Predicated region
        $region57: #{tpu_custom_call.1} parent=55 // pred_check
          %p568 = pneg %p150
        $region58: #{tpu_custom_call.1} parent=55 // pred_check_branch
          %570 = sbr.rel (%p568) target = $region60
        $region59: #{tpu_custom_call.1} parent=55 // pred_region
          %s571 = sand.u32 %s135, 1
          %s572 = scalar_lea.sflag [#allocation5], %s571
          %s573 = sand.u32 %s135, 1
          %s574 = smul.addr %s573, 32
          %s575 = scalar_lea.vmem [#allocation8], %s574
          %576 = dma.done %s572, 512
        $region60: #{tpu_custom_call.1} parent=55 // pred_fallthru
          _
      $region56: #{tpu_custom_call.1} parent=5 // pred_fallthru
        _
    $region6: #{tpu_custom_call.1} parent=1 // loop_footer
      %s22 = sadd.s32 1, %s18
    $region7: #{tpu_custom_call.1} parent=1 // loop_footer_branch
      %17 = sbr.rel target = $region3
    $region8: #{tpu_custom_call.1} parent=1 // loop_exit
      _
    %577 = vsyncpa [#allocation4], 1
    %s578 = scalar_lea.sflag [#allocation4], 1
    %579 = vsyncpa %s578, 1
    %580 = vsyncpa [#allocation7], 1
    %s581 = scalar_lea.sflag [#allocation7], 1
    %582 = vsyncpa %s581, 1
    %583 = vsyncpa [#allocation5], 1
    %s584 = scalar_lea.sflag [#allocation5], 1
    %585 = vsyncpa %s584, 1

</llo_original>
